<compile_context>
chip_gen: v7x
topology: tpu7x:2x2x1
jax: 0.10.0
libtpu: 0.0.40
codegen_flags: <defaults>
</compile_context>

<pallas_src>
import jax
import jax.numpy as jnp
from jax.experimental import pallas as pl
from jax.experimental.pallas import tpu as pltpu


def _drop_path_kernel(scale_ref, x_ref, o_ref):
    # scale_ref: (TB, 1) per-sample scale in f32 (values {0, 1/keep_prob})
    # x_ref / o_ref: (TB, TF) tile of the flattened (B, F) tensor in x.dtype
    o_ref[...] = (x_ref[...] * scale_ref[...]).astype(o_ref.dtype)


def _round_up(a, m):
    return -(-a // m) * m


def _chip_config():
    """Per-generation tiling knobs: (target bytes per VMEM buffer, min grid steps)."""
    kind = ""
    try:
        kind = getattr(jax.devices()[0], "device_kind", "").lower()
    except Exception:
        pass
    if "v7" in kind or "tpu7" in kind:
        # v7x: 3.2 TB/s HBM (bigger tiles amortize per-step overhead) and
        # 2 TensorCores/chip (need >=4 parallel grid steps for load balance).
        return 4 << 20, 4
    if "v6" in kind:
        return 4 << 20, 1        # fits the 32 MiB scoped-VMEM default
    # v5e (16 MiB scoped-VMEM default) and unknown chips: stay conservative.
    return 2 << 20, 1


def _choose_block(B, F, itemsize, target_bytes, min_grid_steps=1):
    """Pick a (TB, TF) tile: lane dim 128-aligned with roughly balanced blocks,
    sublane dim aligned to the dtype's packed sublane tile, ~target_bytes per
    buffer.  Falls back to full dims for tiny arrays."""
    LANE = 128
    SUB = max(8, 32 // max(1, itemsize))   # 8 f32, 16 bf16/fp16, 32 int8/fp8

    # Lane (last) dim: split round_up(F,128) into roughly equal 128-aligned blocks.
    if F >= LANE:
        f_pad = _round_up(F, LANE)
        lane_cap = max(LANE, (target_bytes // (SUB * itemsize)) // LANE * LANE)
        n_f = pl.cdiv(f_pad, lane_cap)
        tf = _round_up(pl.cdiv(f_pad, n_f), LANE)
    else:
        tf = F                              # full-dim exception (handled by caller)

    # Sublane (second-to-last) dim.
    if B >= SUB:
        b_pad = _round_up(B, SUB)
        sub_cap = max(SUB, (target_bytes // (tf * itemsize)) // SUB * SUB)
        n_b = pl.cdiv(b_pad, sub_cap)
        tb = _round_up(pl.cdiv(b_pad, n_b), SUB)
    else:
        tb = B                              # full-dim exception

    # Never exceed the array extents (a clamped dim equals the full dim -> legal).
    tb = min(tb, B)
    tf = min(tf, F)

    # v7x: make sure there are enough grid steps to feed both TensorCores.
    while pl.cdiv(B, tb) * pl.cdiv(F, tf) < min_grid_steps:
        if tf >= 2 * LANE:
            tf = _round_up(tf // 2, LANE)
        elif tb >= 2 * SUB:
            tb = _round_up(tb // 2, SUB)
        else:
            break
    return tb, tf


def drop_path(x, key, drop_prob: float = 0.0, training: bool = False,
              donate_x: bool = False):
    """Per-sample stochastic depth; elementwise hot path runs in Pallas."""
    if drop_prob == 0.0 or not training:
        return x
    keep_prob = 1.0 - float(drop_prob)

    B = x.shape[0]
    F = 1
    for d in x.shape[1:]:
        F *= d

    # One uniform per sample; binarize exactly like torch (floor(keep_prob + u)).
    # Keep the scale in f32 so bf16/fp16 inputs do not inherit a rounded
    # 1/keep_prob bias; the kernel multiplies mixed-precision and casts on store.
    u = jax.random.uniform(key, (B, 1), dtype=jnp.float32)
    scale = jnp.floor(keep_prob + u) * (1.0 / keep_prob)     # f32, {0, 1/keep_prob}

    # Tiny / narrow tensors: lane width < 128 forces masked partial stores and a
    # standalone kernel has no bandwidth advantage -> let XLA fuse plain jnp.
    if F < 128 or B == 0:
        bshape = (B,) + (1,) * (x.ndim - 1)
        return (x * scale.reshape(bshape)).astype(x.dtype)

    x2d = x.reshape(B, F)
    itemsize = jnp.dtype(x.dtype).itemsize
    target_bytes, min_grid_steps = _chip_config()
    tb, tf = _choose_block(B, F, itemsize, target_bytes, min_grid_steps)
    grid = (pl.cdiv(B, tb), pl.cdiv(F, tf))

    out2d = pl.pallas_call(
        _drop_path_kernel,
        out_shape=jax.ShapeDtypeStruct((B, F), x.dtype),
        grid=grid,
        in_specs=[
            pl.BlockSpec((tb, 1), lambda i, j: (i, 0)),     # per-sample scale (f32)
            pl.BlockSpec((tb, tf), lambda i, j: (i, j)),    # x tile
        ],
        out_specs=pl.BlockSpec((tb, tf), lambda i, j: (i, j)),
        input_output_aliases=({1: 0} if donate_x else {}),
        compiler_params=pltpu.CompilerParams(
            dimension_semantics=("parallel", "parallel")),
    )(scale, x2d)

    return out2d.reshape(x.shape)


class DropPath:
    """Mirror of the PyTorch DropPath module (no learnable parameters)."""

    def __init__(self, drop_prob=None):
        self.drop_prob = 0.0 if drop_prob is None else float(drop_prob)
        self.training = True

    def __call__(self, x, key):
        return drop_path(x, key, self.drop_prob, self.training)


if __name__ == "__main__":
    key = jax.random.PRNGKey(0)
    kx, kmask, kx2, kmask2 = jax.random.split(key, 4)

    # Small ViT-like shapes: batch=2, seq=8, hidden=32 (f32 path).
    B, N, C = 2, 8, 32
    x = jax.random.normal(kx, (B, N, C), dtype=jnp.float32)

    module = DropPath(drop_prob=0.25)
    module.training = True
    out = jax.block_until_ready(module(x, kmask))

    # Sanity check: each sample is either all zeros or x / keep_prob.
    keep_prob = 1.0 - module.drop_prob
    for b in range(B):
        kept = jnp.allclose(out[b], x[b] / keep_prob, atol=1e-5)
        dropped = jnp.allclose(out[b], 0.0)
        assert bool(kept) or bool(dropped), "per-sample DropPath semantics violated"

    # bf16 path with a batch that is not a multiple of the packed sublane tile
    # (exercises dtype-aware alignment + mixed-precision scale).
    B2, N2, C2 = 10, 16, 32
    x2 = jax.random.normal(kx2, (B2, N2, C2), dtype=jnp.bfloat16)
    out2 = jax.block_until_ready(drop_path(x2, kmask2, drop_prob=0.25, training=True))
    for b in range(B2):
        kept = jnp.allclose(out2[b].astype(jnp.float32),
                            x2[b].astype(jnp.float32) / keep_prob,
                            atol=2e-2, rtol=2e-2)
        dropped = jnp.allclose(out2[b].astype(jnp.float32), 0.0)
        assert bool(kept) or bool(dropped), "bf16 per-sample DropPath semantics violated"

    # Eval / drop_prob=0 path is the identity.
    module.training = False
    out_eval = jax.block_until_ready(module(x, kmask))
    assert jnp.array_equal(out_eval, x)

    print("KERNEL_OK")
</pallas_src>

<mosaic_0001>
module attributes {stable_mosaic.version = 11 : i64} {
  func.func @_drop_path_kernel(%arg0: i32, %arg1: i32, %arg2: memref<2x1xf32, #tpu.memory_space<vmem>>, %arg3: memref<2x256xf32, #tpu.memory_space<vmem>>, %arg4: memref<2x256xf32, #tpu.memory_space<vmem>>) attributes {dimension_semantics = [#tpu.dimension_semantics<parallel>, #tpu.dimension_semantics<parallel>], iteration_bounds = array<i64: 1, 1>, scalar_prefetch = 0 : i64, scratch_operands = 0 : i64, tpu.core_type = #tpu.core_type<tc>, window_params = [{transform_indices = @transform_0, window_bounds = array<i64: 2, 1>}, {transform_indices = @transform_1, window_bounds = array<i64: 2, 256>}, {transform_indices = @transform_2, window_bounds = array<i64: 2, 256>}]} {
    %c0 = arith.constant 0 : index
    %c0_0 = arith.constant 0 : index
    %0 = vector.load %arg3[%c0, %c0_0] : memref<2x256xf32, #tpu.memory_space<vmem>>, vector<2x256xf32>
    %c0_1 = arith.constant 0 : index
    %c0_2 = arith.constant 0 : index
    %1 = vector.load %arg2[%c0_1, %c0_2] : memref<2x1xf32, #tpu.memory_space<vmem>>, vector<2x1xf32>
    %2 = vector.broadcast %1 : vector<2x1xf32> to vector<2x256xf32>
    %3 = arith.mulf %0, %2 : vector<2x256xf32>
    %c0_3 = arith.constant 0 : index
    %c0_4 = arith.constant 0 : index
    %4 = vector.load %arg4[%c0_3, %c0_4] : memref<2x256xf32, #tpu.memory_space<vmem>>, vector<2x256xf32>
    tpu.vector_store %arg4[%c0_3, %c0_4], %3 {strides = array<i32>} : memref<2x256xf32, #tpu.memory_space<vmem>>, vector<2x256xf32>,
    return
  }
  func.func @transform_0(%arg0: i32, %arg1: i32) -> (i32, i32) {
    %c0_i32 = arith.constant 0 : i32
    %c0_i32_0 = arith.constant 0 : i32
    return %arg0, %c0_i32 : i32, i32
  }
  func.func @transform_1(%arg0: i32, %arg1: i32) -> (i32, i32) {
    %c0_i32 = arith.constant 0 : i32
    return %arg0, %arg1 : i32, i32
  }
  func.func @transform_2(%arg0: i32, %arg1: i32) -> (i32, i32) {
    %c0_i32 = arith.constant 0 : i32
    return %arg0, %arg1 : i32, i32
  }
}

</mosaic_0001>

<llo_original>
// kernel: tpu_custom_call.1
$region0: #{tpu_custom_call.1}
  #allocation0 [shape = 'u32[]', space=smem, size = 0x4, offset = 0x4, fixed_abs, tag = 'smem constant byte address 0x4 - core index']
  #allocation1 [shape = 'u32[144,128]{1,0:T(1,128)}', space=vmem, size = 0x12000, scoped, tag = 'internal scratch']
  %s0 = inlined_call_operand.vmem [shape: f32[2,1], index: 0, kind: input, shape index: {}]
  %s1 = inlined_call_operand.vmem [shape: f32[2,256], index: 1, kind: input, shape index: {}]
  %s2 = inlined_call_operand.hbm [shape: f32[2,256], index: 2, kind: output, shape index: {}]
  %s3 = sld [smem:[#allocation0]]
  $region18: #{tpu_custom_call.1} parent=0
    _
  %s5 = ssub.s32 1, %s3
  %s6 = scalar_select 0, %s5, %s3
  $region1: #{tpu_custom_call.1} parent=0
    #allocation2 [shape = 'u8[2048]{0}', space=vmem, size = 0x800, scoped, tag = 'output window, operand 0, single buffered']
    #allocation3 [shape = 's32[1]{0}', space=sflag, size = 0x4, scoped, tag = 'scoped memory for tpu_custom_call.1']
    %7 = vsyncpa [#allocation3], 0
    // Predicated region
    $region2: #{tpu_custom_call.1} parent=1 // pred_check
      _
    $region3: #{tpu_custom_call.1} parent=1 // pred_check_branch
      %9 = sbr.rel (0) target = $region5
    $region4: #{tpu_custom_call.1} parent=1 // pred_region
      _
    $region5: #{tpu_custom_call.1} parent=1 // pred_fallthru
      _
    // Predicated region
    $region6: #{tpu_custom_call.1} parent=1 // pred_check
      _
    $region7: #{tpu_custom_call.1} parent=1 // pred_check_branch
      %11 = sbr.rel (0) target = $region9
    $region8: #{tpu_custom_call.1} parent=1 // pred_region
      _
    $region9: #{tpu_custom_call.1} parent=1 // pred_fallthru
      _
    %v12 = vld [vmem:[%s1] sm:$0xf]
    %v13 = vld [vmem:[%s0] sm:$0x3]
    %15 = vset.pattern.permute.xlu0 0
    %16 = vperm.xlu0 %15, %v13
    %v17 = vpop.permute.xlu0 %16
    %v19 = vunpack.c.l.s4 269488144
    %v20 = vunpack.c.0.s8 %v19
    %v21 = vlaneseq
    %v22 = vshrl.u32 %v21, 7
    %v23 = vsub.s32 %v20, %v22
    %v24 = vrot.slane %v17, %v23
    %v26 = vmul.f32 %v12, %v24
    %27 = vst [vmem:[#allocation2] sm:$0xf] %v26
    // Predicated region
    $region10: #{tpu_custom_call.1} parent=1 // pred_check
      _
    $region11: #{tpu_custom_call.1} parent=1 // pred_check_branch
      %29 = sbr.rel (0) target = $region13
    $region12: #{tpu_custom_call.1} parent=1 // pred_region
      %s31 = ssub.s32 64, 64
      %32 = vsyncadd [#allocation3], %s31
      %s34 = sshll.u32 [#allocation2], 4
      %s35 = int_to_ptr.vmem [resolvable:$true] %s34
      %37 = dma.vmem_to_hbm [thread:$0]  %s35, 64, %s2, [#allocation3]
    $region13: #{tpu_custom_call.1} parent=1 // pred_fallthru
      _
    // Predicated region
    $region14: #{tpu_custom_call.1} parent=1 // pred_check
      _
    $region15: #{tpu_custom_call.1} parent=1 // pred_check_branch
      %39 = sbr.rel (0) target = $region17
    $region16: #{tpu_custom_call.1} parent=1 // pred_region
      %40 = dma.done [#allocation3], 64
    $region17: #{tpu_custom_call.1} parent=1 // pred_fallthru
      _
    %41 = vsyncpa [#allocation3], 1

</llo_original>
